<compile_context>
chip_gen: v6e
topology: v6e:2x2x1
jax: 0.10.0
libtpu: 0.0.40
codegen_flags: <defaults>
</compile_context>

<pallas_src>
from functools import partial

import jax
import jax.numpy as jnp
from jax.experimental import pallas as pl
from jax.experimental.pallas import tpu as pltpu

K = 3          # ConvTranspose2d kernel size
PAD = 1        # ConvTranspose2d padding
# TODO(synk): the original module call omits kernel_size (it would not even
# construct in PyTorch); kernel_size=3 is assumed so stride=1/padding=1 keeps
# the spatial dims unchanged.


def _tc_per_chip():
    """2 for v7x-class chips (2 TensorCores/chip), else 1.  Best-effort only."""
    try:
        kind = jax.devices()[0].device_kind.lower()
    except Exception:
        return 1
    return 2 if "v7" in kind else 1


def _make_kernel(H, W, nb, cin, cout, slot):
    HW = H * W
    L = nb * HW                     # lanes per grid step (batch folded in)
    KK = K * K
    pow2 = ((H & (H - 1)) == 0) and ((W & (W - 1)) == 0)

    def kernel(x_ref, w_ref, b_ref, o_ref, im2col_ref):
        # x_ref:      (nb, Cin, HW)       nb images of this grid step
        # w_ref:      (Cout, KK*slot)     packed weight, zeros in pad columns
        # b_ref:      (Cout, 1)
        # o_ref:      (nb, Cout, HW)
        # im2col_ref: (KK*slot, L) f32    VMEM scratch (one slot per tap)

        # Fold the batch into the lane axis (HW % 128 == 0 -> aligned concat).
        if nb == 1:
            xf = x_ref[0]
        else:
            xf = jnp.concatenate([x_ref[b] for b in range(nb)], axis=-1)

        # Per-lane within-image row/col indices (no extra inputs needed).
        p = jax.lax.broadcasted_iota(jnp.int32, (1, L), 1)
        if pow2:
            q = p & (HW - 1)
            col = q & (W - 1)
            row = q >> (W.bit_length() - 1)
        else:  # general fallback (not exercised in this demo)
            q = jax.lax.rem(p, HW)
            col = jax.lax.rem(q, W)
            row = jax.lax.div(q, W)

        # Zero the pad rows of every tap slot (scratch VMEM is uninitialized;
        # must be done every step: parallel grid steps get distinct scratch).
        if slot > cin:
            zpad = jnp.zeros((slot - cin, L), jnp.float32)
            for t in range(KK):
                im2col_ref[t * slot + cin:(t + 1) * slot, :] = zpad

        # Build the im2col stack: one rolled + boundary-masked tap per slot.
        for kh in range(K):                        # static 3x3 unroll
            dh = PAD - kh
            for kw in range(K):
                dw = PAD - kw
                t = kh * K + kw
                s = dh * W + dw                    # flattened source offset
                xs = xf if s == 0 else pltpu.roll(xf, shift=(-s) % L, axis=1)
                cond = None
                if dh > 0:
                    cond = row < (H - dh)
                elif dh < 0:
                    cond = row >= -dh
                if dw > 0:
                    c = col < (W - dw)
                    cond = c if cond is None else jnp.logical_and(cond, c)
                elif dw < 0:
                    c = col >= -dw
                    cond = c if cond is None else jnp.logical_and(cond, c)
                if cond is not None:
                    xs = xs * cond.astype(xs.dtype)
                im2col_ref[t * slot:t * slot + cin, :] = xs.astype(jnp.float32)

        # Single fused MXU matmul over K = KK*slot, then bias + sigmoid.
        acc = jnp.dot(w_ref[...], im2col_ref[...],
                      preferred_element_type=jnp.float32)      # (Cout, L)
        acc = acc + b_ref[...]                                 # lane-broadcast
        out = (0.5 * (jnp.tanh(0.5 * acc) + 1.0)).astype(o_ref.dtype)

        # Unfold the batch from the lane axis (lane-aligned static slices).
        for b in range(nb):
            o_ref[b] = out[:, b * HW:(b + 1) * HW]

    return kernel


@partial(jax.jit, static_argnames=("groups",))
def _run(x_nchw, weight, bias, *, groups):
    n, cin, h, w = x_nchw.shape
    cout = weight.shape[1]
    hw = h * w
    assert n % groups == 0
    nb = n // groups
    slot = ((cin + 7) // 8) * 8                   # 16-aligned tap slot height

    # stride=1, pad=1, K=3  =>  output spatial size == input spatial size
    h_out = (h - 1) - 2 * PAD + (K - 1) + 1
    w_out = (w - 1) - 2 * PAD + (K - 1) + 1
    assert (h_out, w_out) == (h, w)

    x_flat = x_nchw.reshape(n, cin, hw)                          # free reshape
    # Tiny one-time weight prep: (Cin,Cout,K,K) -> (Cout, K*K*slot), padded
    # with zero columns so pad rows of the im2col scratch contribute nothing.
    w_t = jnp.transpose(weight, (1, 2, 3, 0))                    # (Cout,K,K,Cin)
    w_packed = jnp.pad(w_t, ((0, 0), (0, 0), (0, 0), (0, slot - cin)))
    w_packed = w_packed.reshape(cout, K * K * slot)
    bias2d = bias.reshape(cout, 1)

    out_flat = pl.pallas_call(
        _make_kernel(h, w, nb, cin, cout, slot),
        out_shape=jax.ShapeDtypeStruct((n, cout, hw), x_nchw.dtype),
        grid=(groups,),
        in_specs=[
            pl.BlockSpec((nb, cin, hw), lambda g: (g, 0, 0)),
            pl.BlockSpec((cout, K * K * slot), lambda g: (0, 0)),
            pl.BlockSpec((cout, 1), lambda g: (0, 0)),
        ],
        out_specs=pl.BlockSpec((nb, cout, hw), lambda g: (g, 0, 0)),
        scratch_shapes=[pltpu.VMEM((K * K * slot, nb * hw), jnp.float32)],
        compiler_params=pltpu.CompilerParams(dimension_semantics=("parallel",)),
    )(x_flat, w_packed, bias2d)

    return out_flat.reshape(n, cout, h_out, w_out)               # free reshape


def conv_transpose_sigmoid(x_nchw, weight, bias):
    """x: (N,Cin,H,W); weight: (Cin,Cout,K,K) [PyTorch ConvTranspose2d layout];
    bias: (Cout,).  Returns sigmoid(conv_t(x)) as (N,Cout,H,W)."""
    n = x_nchw.shape[0]
    # 1 grid step on 1-TC chips (v5e/v6e); 2 parallel steps on v7x (2 TCs).
    groups = 2 if (_tc_per_chip() >= 2 and n >= 2 and n % 2 == 0) else 1
    return _run(x_nchw, weight, bias, groups=groups)


if __name__ == "__main__":
    key = jax.random.PRNGKey(0)
    k1, k2, k3 = jax.random.split(key, 3)

    N, C, H, W = 2, 10, 16, 16                   # channels fixed at 10 by the module
    x = jax.random.normal(k1, (N, C, H, W), jnp.float32)

    # Deterministic parameter init (PyTorch-style uniform(-1/sqrt(fan), ...))
    fan = C * K * K
    bound = 1.0 / (fan ** 0.5)
    weight = jax.random.uniform(k2, (C, C, K, K), jnp.float32, -bound, bound)
    bias = jax.random.uniform(k3, (C,), jnp.float32, -bound, bound)

    out = jax.block_until_ready(conv_transpose_sigmoid(x, weight, bias))

    # Pure-JAX reference: stride-1 transposed conv == conv with flipped weight
    w_hwio = jnp.transpose(jnp.flip(weight, axis=(2, 3)), (2, 3, 0, 1))
    ref = jax.lax.conv_general_dilated(
        jnp.transpose(x, (0, 2, 3, 1)), w_hwio,
        window_strides=(1, 1),
        padding=[(K - 1 - PAD, K - 1 - PAD)] * 2,
        dimension_numbers=("NHWC", "HWIO", "NHWC"))
    ref = jax.nn.sigmoid(ref + bias[None, None, None, :])
    ref = jnp.transpose(ref, (0, 3, 1, 2))

    assert out.shape == (N, C, H, W)
    assert jnp.allclose(out, ref, atol=5e-5, rtol=5e-5)
    print("KERNEL_OK")
</pallas_src>

<mosaic_0001>
module attributes {stable_mosaic.version = 11 : i64} {
  func.func @kernel(%arg0: i32, %arg1: memref<2x10x256xf32, #tpu.memory_space<vmem>>, %arg2: memref<10x144xf32, #tpu.memory_space<vmem>>, %arg3: memref<10x1xf32, #tpu.memory_space<vmem>>, %arg4: memref<2x10x256xf32, #tpu.memory_space<vmem>>, %arg5: memref<144x512xf32, #tpu.memory_space<vmem>>) attributes {dimension_semantics = [#tpu.dimension_semantics<parallel>], iteration_bounds = array<i64: 1>, scalar_prefetch = 0 : i64, scratch_operands = 1 : i64, tpu.core_type = #tpu.core_type<tc>, window_params = [{transform_indices = @transform_0, window_bounds = array<i64: 2, 10, 256>}, {pipeline_mode = #tpu.pipeline_mode<synchronous>, transform_indices = @transform_1, window_bounds = array<i64: 10, 144>}, {pipeline_mode = #tpu.pipeline_mode<synchronous>, transform_indices = @transform_2, window_bounds = array<i64: 10, 1>}, {transform_indices = @transform_3, window_bounds = array<i64: 2, 10, 256>}]} {
    %c0 = arith.constant 0 : index
    %c0_0 = arith.constant 0 : index
    %c0_1 = arith.constant 0 : index
    %0 = vector.load %arg1[%c0, %c0_0, %c0_1] : memref<2x10x256xf32, #tpu.memory_space<vmem>>, vector<1x10x256xf32>
    %1 = vector.shape_cast %0 : vector<1x10x256xf32> to vector<10x256xf32>
    %c1 = arith.constant 1 : index
    %c0_2 = arith.constant 0 : index
    %c0_3 = arith.constant 0 : index
    %2 = vector.load %arg1[%c1, %c0_2, %c0_3] : memref<2x10x256xf32, #tpu.memory_space<vmem>>, vector<1x10x256xf32>
    %3 = vector.shape_cast %2 : vector<1x10x256xf32> to vector<10x256xf32>
    %4 = tpu.concatenate %1, %3 in 1 : vector<10x256xf32>, vector<10x256xf32> -> vector<10x512xf32>
    %5 = tpu.iota {dimensions = array<i32: 1>} : vector<1x512xi32>
    %c255_i32 = arith.constant 255 : i32
    %6 = vector.broadcast %c255_i32 : i32 to vector<1x512xi32>
    %7 = arith.andi %5, %6 : vector<1x512xi32>
    %c15_i32 = arith.constant 15 : i32
    %8 = vector.broadcast %c15_i32 : i32 to vector<1x512xi32>
    %9 = arith.andi %7, %8 : vector<1x512xi32>
    %c4_i32 = arith.constant 4 : i32
    %10 = vector.broadcast %c4_i32 : i32 to vector<1x512xi32>
    %11 = arith.shrsi %7, %10 : vector<1x512xi32>
    %cst = arith.constant 0.000000e+00 : f32
    %12 = vector.broadcast %cst : f32 to vector<6x512xf32>
    %c10 = arith.constant 10 : index
    %c0_4 = arith.constant 0 : index
    %13 = vector.load %arg5[%c10, %c0_4] : memref<144x512xf32, #tpu.memory_space<vmem>>, vector<6x512xf32>
    tpu.vector_store %arg5[%c10, %c0_4], %12 {strides = array<i32>} : memref<144x512xf32, #tpu.memory_space<vmem>>, vector<6x512xf32>,
    %c26 = arith.constant 26 : index
    %c0_5 = arith.constant 0 : index
    %14 = vector.load %arg5[%c26, %c0_5] : memref<144x512xf32, #tpu.memory_space<vmem>>, vector<6x512xf32>
    tpu.vector_store %arg5[%c26, %c0_5], %12 {strides = array<i32>} : memref<144x512xf32, #tpu.memory_space<vmem>>, vector<6x512xf32>,
    %c42 = arith.constant 42 : index
    %c0_6 = arith.constant 0 : index
    %15 = vector.load %arg5[%c42, %c0_6] : memref<144x512xf32, #tpu.memory_space<vmem>>, vector<6x512xf32>
    tpu.vector_store %arg5[%c42, %c0_6], %12 {strides = array<i32>} : memref<144x512xf32, #tpu.memory_space<vmem>>, vector<6x512xf32>,
    %c58 = arith.constant 58 : index
    %c0_7 = arith.constant 0 : index
    %16 = vector.load %arg5[%c58, %c0_7] : memref<144x512xf32, #tpu.memory_space<vmem>>, vector<6x512xf32>
    tpu.vector_store %arg5[%c58, %c0_7], %12 {strides = array<i32>} : memref<144x512xf32, #tpu.memory_space<vmem>>, vector<6x512xf32>,
    %c74 = arith.constant 74 : index
    %c0_8 = arith.constant 0 : index
    %17 = vector.load %arg5[%c74, %c0_8] : memref<144x512xf32, #tpu.memory_space<vmem>>, vector<6x512xf32>
    tpu.vector_store %arg5[%c74, %c0_8], %12 {strides = array<i32>} : memref<144x512xf32, #tpu.memory_space<vmem>>, vector<6x512xf32>,
    %c90 = arith.constant 90 : index
    %c0_9 = arith.constant 0 : index
    %18 = vector.load %arg5[%c90, %c0_9] : memref<144x512xf32, #tpu.memory_space<vmem>>, vector<6x512xf32>
    tpu.vector_store %arg5[%c90, %c0_9], %12 {strides = array<i32>} : memref<144x512xf32, #tpu.memory_space<vmem>>, vector<6x512xf32>,
    %c106 = arith.constant 106 : index
    %c0_10 = arith.constant 0 : index
    %19 = vector.load %arg5[%c106, %c0_10] : memref<144x512xf32, #tpu.memory_space<vmem>>, vector<6x512xf32>
    tpu.vector_store %arg5[%c106, %c0_10], %12 {strides = array<i32>} : memref<144x512xf32, #tpu.memory_space<vmem>>, vector<6x512xf32>,
    %c122 = arith.constant 122 : index
    %c0_11 = arith.constant 0 : index
    %20 = vector.load %arg5[%c122, %c0_11] : memref<144x512xf32, #tpu.memory_space<vmem>>, vector<6x512xf32>
    tpu.vector_store %arg5[%c122, %c0_11], %12 {strides = array<i32>} : memref<144x512xf32, #tpu.memory_space<vmem>>, vector<6x512xf32>,
    %c138 = arith.constant 138 : index
    %c0_12 = arith.constant 0 : index
    %21 = vector.load %arg5[%c138, %c0_12] : memref<144x512xf32, #tpu.memory_space<vmem>>, vector<6x512xf32>
    tpu.vector_store %arg5[%c138, %c0_12], %12 {strides = array<i32>} : memref<144x512xf32, #tpu.memory_space<vmem>>, vector<6x512xf32>,
    %c495_i32 = arith.constant 495 : i32
    %22 = tpu.dynamic_rotate %4 by %c495_i32 dim 1 : vector<10x512xf32>, i32 -> vector<10x512xf32>
    %c15_i32_13 = arith.constant 15 : i32
    %23 = vector.broadcast %c15_i32_13 : i32 to vector<1x512xi32>
    %24 = arith.cmpi slt, %11, %23 : vector<1x512xi32>
    %c15_i32_14 = arith.constant 15 : i32
    %25 = vector.broadcast %c15_i32_14 : i32 to vector<1x512xi32>
    %26 = arith.cmpi slt, %9, %25 : vector<1x512xi32>
    %27 = arith.andi %24, %26 : vector<1x512xi1>
    %28 = arith.extui %27 : vector<1x512xi1> to vector<1x512xi32>
    %29 = arith.sitofp %28 : vector<1x512xi32> to vector<1x512xf32>
    %30 = vector.broadcast %29 : vector<1x512xf32> to vector<10x512xf32>
    %31 = arith.mulf %22, %30 : vector<10x512xf32>
    %c0_15 = arith.constant 0 : index
    %c0_16 = arith.constant 0 : index
    %32 = vector.load %arg5[%c0_15, %c0_16] : memref<144x512xf32, #tpu.memory_space<vmem>>, vector<10x512xf32>
    tpu.vector_store %arg5[%c0_15, %c0_16], %31 {strides = array<i32>} : memref<144x512xf32, #tpu.memory_space<vmem>>, vector<10x512xf32>,
    %c496_i32 = arith.constant 496 : i32
    %33 = tpu.dynamic_rotate %4 by %c496_i32 dim 1 : vector<10x512xf32>, i32 -> vector<10x512xf32>
    %c15_i32_17 = arith.constant 15 : i32
    %34 = vector.broadcast %c15_i32_17 : i32 to vector<1x512xi32>
    %35 = arith.cmpi slt, %11, %34 : vector<1x512xi32>
    %36 = arith.extui %35 : vector<1x512xi1> to vector<1x512xi32>
    %37 = arith.sitofp %36 : vector<1x512xi32> to vector<1x512xf32>
    %38 = vector.broadcast %37 : vector<1x512xf32> to vector<10x512xf32>
    %39 = arith.mulf %33, %38 : vector<10x512xf32>
    %c16 = arith.constant 16 : index
    %c0_18 = arith.constant 0 : index
    %40 = vector.load %arg5[%c16, %c0_18] : memref<144x512xf32, #tpu.memory_space<vmem>>, vector<10x512xf32>
    tpu.vector_store %arg5[%c16, %c0_18], %39 {strides = array<i32>} : memref<144x512xf32, #tpu.memory_space<vmem>>, vector<10x512xf32>,
    %c497_i32 = arith.constant 497 : i32
    %41 = tpu.dynamic_rotate %4 by %c497_i32 dim 1 : vector<10x512xf32>, i32 -> vector<10x512xf32>
    %c15_i32_19 = arith.constant 15 : i32
    %42 = vector.broadcast %c15_i32_19 : i32 to vector<1x512xi32>
    %43 = arith.cmpi slt, %11, %42 : vector<1x512xi32>
    %c1_i32 = arith.constant 1 : i32
    %44 = vector.broadcast %c1_i32 : i32 to vector<1x512xi32>
    %45 = arith.cmpi sge, %9, %44 : vector<1x512xi32>
    %46 = arith.andi %43, %45 : vector<1x512xi1>
    %47 = arith.extui %46 : vector<1x512xi1> to vector<1x512xi32>
    %48 = arith.sitofp %47 : vector<1x512xi32> to vector<1x512xf32>
    %49 = vector.broadcast %48 : vector<1x512xf32> to vector<10x512xf32>
    %50 = arith.mulf %41, %49 : vector<10x512xf32>
    %c32 = arith.constant 32 : index
    %c0_20 = arith.constant 0 : index
    %51 = vector.load %arg5[%c32, %c0_20] : memref<144x512xf32, #tpu.memory_space<vmem>>, vector<10x512xf32>
    tpu.vector_store %arg5[%c32, %c0_20], %50 {strides = array<i32>} : memref<144x512xf32, #tpu.memory_space<vmem>>, vector<10x512xf32>,
    %c511_i32 = arith.constant 511 : i32
    %52 = tpu.dynamic_rotate %4 by %c511_i32 dim 1 : vector<10x512xf32>, i32 -> vector<10x512xf32>
    %c15_i32_21 = arith.constant 15 : i32
    %53 = vector.broadcast %c15_i32_21 : i32 to vector<1x512xi32>
    %54 = arith.cmpi slt, %9, %53 : vector<1x512xi32>
    %55 = arith.extui %54 : vector<1x512xi1> to vector<1x512xi32>
    %56 = arith.sitofp %55 : vector<1x512xi32> to vector<1x512xf32>
    %57 = vector.broadcast %56 : vector<1x512xf32> to vector<10x512xf32>
    %58 = arith.mulf %52, %57 : vector<10x512xf32>
    %c48 = arith.constant 48 : index
    %c0_22 = arith.constant 0 : index
    %59 = vector.load %arg5[%c48, %c0_22] : memref<144x512xf32, #tpu.memory_space<vmem>>, vector<10x512xf32>
    tpu.vector_store %arg5[%c48, %c0_22], %58 {strides = array<i32>} : memref<144x512xf32, #tpu.memory_space<vmem>>, vector<10x512xf32>,
    %c64 = arith.constant 64 : index
    %c0_23 = arith.constant 0 : index
    %60 = vector.load %arg5[%c64, %c0_23] : memref<144x512xf32, #tpu.memory_space<vmem>>, vector<10x512xf32>
    tpu.vector_store %arg5[%c64, %c0_23], %4 {strides = array<i32>} : memref<144x512xf32, #tpu.memory_space<vmem>>, vector<10x512xf32>,
    %c1_i32_24 = arith.constant 1 : i32
    %61 = tpu.dynamic_rotate %4 by %c1_i32_24 dim 1 : vector<10x512xf32>, i32 -> vector<10x512xf32>
    %c1_i32_25 = arith.constant 1 : i32
    %62 = vector.broadcast %c1_i32_25 : i32 to vector<1x512xi32>
    %63 = arith.cmpi sge, %9, %62 : vector<1x512xi32>
    %64 = arith.extui %63 : vector<1x512xi1> to vector<1x512xi32>
    %65 = arith.sitofp %64 : vector<1x512xi32> to vector<1x512xf32>
    %66 = vector.broadcast %65 : vector<1x512xf32> to vector<10x512xf32>
    %67 = arith.mulf %61, %66 : vector<10x512xf32>
    %c80 = arith.constant 80 : index
    %c0_26 = arith.constant 0 : index
    %68 = vector.load %arg5[%c80, %c0_26] : memref<144x512xf32, #tpu.memory_space<vmem>>, vector<10x512xf32>
    tpu.vector_store %arg5[%c80, %c0_26], %67 {strides = array<i32>} : memref<144x512xf32, #tpu.memory_space<vmem>>, vector<10x512xf32>,
    %c15_i32_27 = arith.constant 15 : i32
    %69 = tpu.dynamic_rotate %4 by %c15_i32_27 dim 1 : vector<10x512xf32>, i32 -> vector<10x512xf32>
    %c1_i32_28 = arith.constant 1 : i32
    %70 = vector.broadcast %c1_i32_28 : i32 to vector<1x512xi32>
    %71 = arith.cmpi sge, %11, %70 : vector<1x512xi32>
    %c15_i32_29 = arith.constant 15 : i32
    %72 = vector.broadcast %c15_i32_29 : i32 to vector<1x512xi32>
    %73 = arith.cmpi slt, %9, %72 : vector<1x512xi32>
    %74 = arith.andi %71, %73 : vector<1x512xi1>
    %75 = arith.extui %74 : vector<1x512xi1> to vector<1x512xi32>
    %76 = arith.sitofp %75 : vector<1x512xi32> to vector<1x512xf32>
    %77 = vector.broadcast %76 : vector<1x512xf32> to vector<10x512xf32>
    %78 = arith.mulf %69, %77 : vector<10x512xf32>
    %c96 = arith.constant 96 : index
    %c0_30 = arith.constant 0 : index
    %79 = vector.load %arg5[%c96, %c0_30] : memref<144x512xf32, #tpu.memory_space<vmem>>, vector<10x512xf32>
    tpu.vector_store %arg5[%c96, %c0_30], %78 {strides = array<i32>} : memref<144x512xf32, #tpu.memory_space<vmem>>, vector<10x512xf32>,
    %c16_i32 = arith.constant 16 : i32
    %80 = tpu.dynamic_rotate %4 by %c16_i32 dim 1 : vector<10x512xf32>, i32 -> vector<10x512xf32>
    %c1_i32_31 = arith.constant 1 : i32
    %81 = vector.broadcast %c1_i32_31 : i32 to vector<1x512xi32>
    %82 = arith.cmpi sge, %11, %81 : vector<1x512xi32>
    %83 = arith.extui %82 : vector<1x512xi1> to vector<1x512xi32>
    %84 = arith.sitofp %83 : vector<1x512xi32> to vector<1x512xf32>
    %85 = vector.broadcast %84 : vector<1x512xf32> to vector<10x512xf32>
    %86 = arith.mulf %80, %85 : vector<10x512xf32>
    %c112 = arith.constant 112 : index
    %c0_32 = arith.constant 0 : index
    %87 = vector.load %arg5[%c112, %c0_32] : memref<144x512xf32, #tpu.memory_space<vmem>>, vector<10x512xf32>
    tpu.vector_store %arg5[%c112, %c0_32], %86 {strides = array<i32>} : memref<144x512xf32, #tpu.memory_space<vmem>>, vector<10x512xf32>,
    %c17_i32 = arith.constant 17 : i32
    %88 = tpu.dynamic_rotate %4 by %c17_i32 dim 1 : vector<10x512xf32>, i32 -> vector<10x512xf32>
    %c1_i32_33 = arith.constant 1 : i32
    %89 = vector.broadcast %c1_i32_33 : i32 to vector<1x512xi32>
    %90 = arith.cmpi sge, %11, %89 : vector<1x512xi32>
    %c1_i32_34 = arith.constant 1 : i32
    %91 = vector.broadcast %c1_i32_34 : i32 to vector<1x512xi32>
    %92 = arith.cmpi sge, %9, %91 : vector<1x512xi32>
    %93 = arith.andi %90, %92 : vector<1x512xi1>
    %94 = arith.extui %93 : vector<1x512xi1> to vector<1x512xi32>
    %95 = arith.sitofp %94 : vector<1x512xi32> to vector<1x512xf32>
    %96 = vector.broadcast %95 : vector<1x512xf32> to vector<10x512xf32>
    %97 = arith.mulf %88, %96 : vector<10x512xf32>
    %c128 = arith.constant 128 : index
    %c0_35 = arith.constant 0 : index
    %98 = vector.load %arg5[%c128, %c0_35] : memref<144x512xf32, #tpu.memory_space<vmem>>, vector<10x512xf32>
    tpu.vector_store %arg5[%c128, %c0_35], %97 {strides = array<i32>} : memref<144x512xf32, #tpu.memory_space<vmem>>, vector<10x512xf32>,
    %c0_36 = arith.constant 0 : index
    %c0_37 = arith.constant 0 : index
    %99 = vector.load %arg2[%c0_36, %c0_37] : memref<10x144xf32, #tpu.memory_space<vmem>>, vector<10x144xf32>
    %c0_38 = arith.constant 0 : index
    %c0_39 = arith.constant 0 : index
    %100 = vector.load %arg5[%c0_38, %c0_39] : memref<144x512xf32, #tpu.memory_space<vmem>>, vector<144x512xf32>
    %cst_40 = arith.constant dense<0.000000e+00> : vector<10x512xf32>
    %101 = tpu.matmul %99, %100, %cst_40 {dimension_numbers = #tpu.dot_dimension_numbers<[1], [0], [0], [1], [0, 0, 1, 1], [], []>} : vector<10x144xf32>, vector<144x512xf32>, vector<10x512xf32> -> vector<10x512xf32>
    %c0_41 = arith.constant 0 : index
    %c0_42 = arith.constant 0 : index
    %102 = vector.load %arg3[%c0_41, %c0_42] : memref<10x1xf32, #tpu.memory_space<vmem>>, vector<10x1xf32>
    %103 = vector.broadcast %102 : vector<10x1xf32> to vector<10x512xf32>
    %104 = arith.addf %101, %103 : vector<10x512xf32>
    %cst_43 = arith.constant 5.000000e-01 : f32
    %105 = vector.broadcast %cst_43 : f32 to vector<10x512xf32>
    %106 = arith.mulf %105, %104 : vector<10x512xf32>
    %107 = math.tanh %106 : vector<10x512xf32>
    %cst_44 = arith.constant 1.000000e+00 : f32
    %108 = vector.broadcast %cst_44 : f32 to vector<10x512xf32>
    %109 = arith.addf %107, %108 : vector<10x512xf32>
    %cst_45 = arith.constant 5.000000e-01 : f32
    %110 = vector.broadcast %cst_45 : f32 to vector<10x512xf32>
    %111 = arith.mulf %110, %109 : vector<10x512xf32>
    %112 = vector.extract_strided_slice %111 {offsets = [0, 0], sizes = [10, 256], strides = [1, 1]} : vector<10x512xf32> to vector<10x256xf32>
    %c0_46 = arith.constant 0 : index
    %c0_47 = arith.constant 0 : index
    %c0_48 = arith.constant 0 : index
    %113 = vector.load %arg4[%c0_46, %c0_47, %c0_48] : memref<2x10x256xf32, #tpu.memory_space<vmem>>, vector<1x10x256xf32>
    %114 = vector.shape_cast %113 : vector<1x10x256xf32> to vector<10x256xf32>
    %115 = vector.shape_cast %112 : vector<10x256xf32> to vector<1x10x256xf32>
    tpu.vector_store %arg4[%c0_46, %c0_47, %c0_48], %115 {strides = array<i32>} : memref<2x10x256xf32, #tpu.memory_space<vmem>>, vector<1x10x256xf32>,
    %116 = vector.extract_strided_slice %111 {offsets = [0, 256], sizes = [10, 256], strides = [1, 1]} : vector<10x512xf32> to vector<10x256xf32>
    %c1_49 = arith.constant 1 : index
    %c0_50 = arith.constant 0 : index
    %c0_51 = arith.constant 0 : index
    %117 = vector.load %arg4[%c1_49, %c0_50, %c0_51] : memref<2x10x256xf32, #tpu.memory_space<vmem>>, vector<1x10x256xf32>
    %118 = vector.shape_cast %117 : vector<1x10x256xf32> to vector<10x256xf32>
    %119 = vector.shape_cast %116 : vector<10x256xf32> to vector<1x10x256xf32>
    tpu.vector_store %arg4[%c1_49, %c0_50, %c0_51], %119 {strides = array<i32>} : memref<2x10x256xf32, #tpu.memory_space<vmem>>, vector<1x10x256xf32>,
    return
  }
  func.func @transform_0(%arg0: i32) -> (i32, i32, i32) {
    %c0_i32 = arith.constant 0 : i32
    %c0_i32_0 = arith.constant 0 : i32
    %c0_i32_1 = arith.constant 0 : i32
    return %arg0, %c0_i32, %c0_i32_0 : i32, i32, i32
  }
  func.func @transform_1(%arg0: i32) -> (i32, i32) {
    %c0_i32 = arith.constant 0 : i32
    %c0_i32_0 = arith.constant 0 : i32
    %c0_i32_1 = arith.constant 0 : i32
    return %c0_i32, %c0_i32_0 : i32, i32
  }
  func.func @transform_2(%arg0: i32) -> (i32, i32) {
    %c0_i32 = arith.constant 0 : i32
    %c0_i32_0 = arith.constant 0 : i32
    %c0_i32_1 = arith.constant 0 : i32
    return %c0_i32, %c0_i32_0 : i32, i32
  }
  func.func @transform_3(%arg0: i32) -> (i32, i32, i32) {
    %c0_i32 = arith.constant 0 : i32
    %c0_i32_0 = arith.constant 0 : i32
    %c0_i32_1 = arith.constant 0 : i32
    return %arg0, %c0_i32, %c0_i32_0 : i32, i32, i32
  }
}

</mosaic_0001>

<llo_original>
// kernel: _run.1
$region0: #{_run.1}
  #allocation0 [shape = 'u32[]', space=smem, size = 0x4, offset = 0x4, fixed_abs, tag = 'smem constant byte address 0x4 - core index']
  #allocation1 [shape = 'u32[144,128]{1,0:T(1,128)}', space=vmem, size = 0x12000, scoped, tag = 'internal scratch']
  #allocation2 [shape = 'f32[144,512]{1,0:T(8,128)}', space=vmem, size = 0x48000, scoped, tag = 'scratch operand']
  %s0 = inlined_call_operand.vmem [shape: f32[2,10,256], index: 0, kind: input, shape index: {}]
  %s1 = inlined_call_operand.vmem [shape: f32[10,144], index: 1, kind: input, shape index: {}]
  %s2 = inlined_call_operand.vmem [shape: f32[10,1], index: 2, kind: input, shape index: {}]
  %s3 = inlined_call_operand.vmem [shape: f32[2,10,256], index: 3, kind: output, shape index: {}]
  %s4 = sld [smem:[#allocation0]]
  $region22: #{_run.1} parent=0
    _
  %s6 = ssub.s32 1, %s4
  %s7 = scalar_select 0, %s6, %s4
  // Predicated region
  $region2: #{_run.1} parent=0 // pred_check
    _
  $region3: #{_run.1} parent=0 // pred_check_branch
    %9 = sbr.rel (0) target = $region5
  $region4: #{_run.1} parent=0 // pred_region
    _
  $region5: #{_run.1} parent=0 // pred_fallthru
    _
  // Predicated region
  $region6: #{_run.1} parent=0 // pred_check
    _
  $region7: #{_run.1} parent=0 // pred_check_branch
    %11 = sbr.rel (0) target = $region9
  $region8: #{_run.1} parent=0 // pred_region
    _
  $region9: #{_run.1} parent=0 // pred_fallthru
    _
  // Predicated region
  $region10: #{_run.1} parent=0 // pred_check
    _
  $region11: #{_run.1} parent=0 // pred_check_branch
    %13 = sbr.rel (0) target = $region13
  $region12: #{_run.1} parent=0 // pred_region
    _
  $region13: #{_run.1} parent=0 // pred_fallthru
    _
  %v14 = vld [vmem:[%s0] sm:$0xff]
  %v15 = vld [vmem:[%s0 + $0x8] sm:$0xff]
  %v16 = vld [vmem:[%s0 + $0x10] sm:$0x3]
  %v17 = vld [vmem:[%s0 + $0x18] sm:$0x3]
  %s18 = scalar_lea.vmem %s0, 32
  %v19 = vld [vmem:[%s18] sm:$0xff]
  %v20 = vld [vmem:[%s18 + $0x8] sm:$0xff]
  %v21 = vld [vmem:[%s18 + $0x10] sm:$0x3]
  %v22 = vld [vmem:[%s18 + $0x18] sm:$0x3]
  %v23 = vlaneseq
  %v24 = vand.u32 %v23, 127
  %v25 = vadd.s32 %v24, 128
  %v26 = vadd.s32 %v24, 256
  %v27 = vadd.s32 %v24, 384
  %v28 = vand.u32 %v24, 255
  %v29 = vand.u32 %v25, 255
  %v30 = vand.u32 %v26, 255
  %v31 = vand.u32 %v27, 255
  %v32 = vand.u32 %v28, 15
  %v33 = vand.u32 %v29, 15
  %v34 = vand.u32 %v30, 15
  %v35 = vand.u32 %v31, 15
  %v36 = vshra.s32 %v28, 4
  %v37 = vshra.s32 %v29, 4
  %v38 = vshra.s32 %v30, 4
  %v39 = vshra.s32 %v31, 4
  %40 = vst [vmem:[#allocation2 + $0x20] sm:$0xfc] 0.0
  %41 = vst [vmem:[#allocation2 + $0x28] sm:$0xfc] 0.0
  %42 = vst [vmem:[#allocation2 + $0x30] sm:$0xfc] 0.0
  %43 = vst [vmem:[#allocation2 + $0x38] sm:$0xfc] 0.0
  %44 = vst [vmem:[#allocation2 + $0x60] sm:$0xfc] 0.0
  %45 = vst [vmem:[#allocation2 + $0x68] sm:$0xfc] 0.0
  %46 = vst [vmem:[#allocation2 + $0x70] sm:$0xfc] 0.0
  %47 = vst [vmem:[#allocation2 + $0x78] sm:$0xfc] 0.0
  %48 = vst [vmem:[#allocation2 + $0xa0] sm:$0xfc] 0.0
  %49 = vst [vmem:[#allocation2 + $0xa8] sm:$0xfc] 0.0
  %50 = vst [vmem:[#allocation2 + $0xb0] sm:$0xfc] 0.0
  %51 = vst [vmem:[#allocation2 + $0xb8] sm:$0xfc] 0.0
  %52 = vst [vmem:[#allocation2 + $0xe0] sm:$0xfc] 0.0
  %53 = vst [vmem:[#allocation2 + $0xe8] sm:$0xfc] 0.0
  %54 = vst [vmem:[#allocation2 + $0xf0] sm:$0xfc] 0.0
  %55 = vst [vmem:[#allocation2 + $0xf8] sm:$0xfc] 0.0
  %56 = vst [vmem:[#allocation2 + $0x120] sm:$0xfc] 0.0
  %57 = vst [vmem:[#allocation2 + $0x128] sm:$0xfc] 0.0
  %58 = vst [vmem:[#allocation2 + $0x130] sm:$0xfc] 0.0
  %59 = vst [vmem:[#allocation2 + $0x138] sm:$0xfc] 0.0
  %60 = vst [vmem:[#allocation2 + $0x160] sm:$0xfc] 0.0
  %61 = vst [vmem:[#allocation2 + $0x168] sm:$0xfc] 0.0
  %62 = vst [vmem:[#allocation2 + $0x170] sm:$0xfc] 0.0
  %63 = vst [vmem:[#allocation2 + $0x178] sm:$0xfc] 0.0
  %64 = vst [vmem:[#allocation2 + $0x1a0] sm:$0xfc] 0.0
  %65 = vst [vmem:[#allocation2 + $0x1a8] sm:$0xfc] 0.0
  %66 = vst [vmem:[#allocation2 + $0x1b0] sm:$0xfc] 0.0
  %67 = vst [vmem:[#allocation2 + $0x1b8] sm:$0xfc] 0.0
  %68 = vst [vmem:[#allocation2 + $0x1e0] sm:$0xfc] 0.0
  %69 = vst [vmem:[#allocation2 + $0x1e8] sm:$0xfc] 0.0
  %70 = vst [vmem:[#allocation2 + $0x1f0] sm:$0xfc] 0.0
  %71 = vst [vmem:[#allocation2 + $0x1f8] sm:$0xfc] 0.0
  %72 = vst [vmem:[#allocation2 + $0x220] sm:$0xfc] 0.0
  %73 = vst [vmem:[#allocation2 + $0x228] sm:$0xfc] 0.0
  %74 = vst [vmem:[#allocation2 + $0x230] sm:$0xfc] 0.0
  %75 = vst [vmem:[#allocation2 + $0x238] sm:$0xfc] 0.0
  %76 = vrot.lane.b32.xlu0 %v14, 111
  %v77 = vpop.permute.xlu0 %76
  %78 = vrot.lane.b32.xlu0 %v16, 111
  %v79 = vpop.permute.xlu0 %78
  %80 = vrot.lane.b32.xlu0 %v15, 111
  %v81 = vpop.permute.xlu0 %80
  %82 = vrot.lane.b32.xlu0 %v17, 111
  %v83 = vpop.permute.xlu0 %82
  %84 = vrot.lane.b32.xlu0 %v19, 111
  %v85 = vpop.permute.xlu0 %84
  %86 = vrot.lane.b32.xlu0 %v21, 111
  %v87 = vpop.permute.xlu0 %86
  %88 = vrot.lane.b32.xlu0 %v20, 111
  %v89 = vpop.permute.xlu0 %88
  %90 = vrot.lane.b32.xlu0 %v22, 111
  %v91 = vpop.permute.xlu0 %90
  %vm92 = vcmp.lt.s32.totalorder %v24, 111
  %v93 = vsel %vm92, %v85, %v89
  %v94 = vsel %vm92, %v87, %v91
  %v95 = vsel %vm92, %v81, %v85
  %v96 = vsel %vm92, %v83, %v87
  %v97 = vsel %vm92, %v77, %v81
  %v98 = vsel %vm92, %v79, %v83
  %v99 = vsel %vm92, %v89, %v77
  %v100 = vsel %vm92, %v91, %v79
  %vm101 = vcmp.lt.s32.totalorder %v36, 15
  %vm102 = vcmp.lt.s32.totalorder %v37, 15
  %vm103 = vcmp.lt.s32.totalorder %v38, 15
  %vm104 = vcmp.lt.s32.totalorder %v39, 15
  %vm105 = vcmp.lt.s32.totalorder %v32, 15
  %vm106 = vcmp.lt.s32.totalorder %v33, 15
  %vm107 = vcmp.lt.s32.totalorder %v34, 15
  %vm108 = vcmp.lt.s32.totalorder %v35, 15
  %vm109 = vmand %vm101, %vm105
  %vm110 = vmand %vm102, %vm106
  %vm111 = vmand %vm103, %vm107
  %vm112 = vmand %vm104, %vm108
  %v113 = vsel %vm109, 1, 0
  %v114 = vsel %vm110, 1, 0
  %v115 = vsel %vm111, 1, 0
  %v116 = vsel %vm112, 1, 0
  %v117 = vcvt.s32.f32 %v113
  %v118 = vcvt.s32.f32 %v114
  %v119 = vcvt.s32.f32 %v115
  %v120 = vcvt.s32.f32 %v116
  %v121 = vmul.f32 %v97, %v117
  %v122 = vmul.f32 %v95, %v118
  %v123 = vmul.f32 %v93, %v119
  %v124 = vmul.f32 %v99, %v120
  %v125 = vmul.f32 %v98, %v117
  %v126 = vmul.f32 %v96, %v118
  %v127 = vmul.f32 %v94, %v119
  %v128 = vmul.f32 %v100, %v120
  %129 = vst [vmem:[#allocation2] sm:$0xff] %v121
  %130 = vst [vmem:[#allocation2 + $0x8] sm:$0xff] %v122
  %131 = vst [vmem:[#allocation2 + $0x10] sm:$0xff] %v123
  %132 = vst [vmem:[#allocation2 + $0x18] sm:$0xff] %v124
  %133 = vst [vmem:[#allocation2 + $0x20] sm:$0x3] %v125
  %134 = vst [vmem:[#allocation2 + $0x28] sm:$0x3] %v126
  %135 = vst [vmem:[#allocation2 + $0x30] sm:$0x3] %v127
  %136 = vst [vmem:[#allocation2 + $0x38] sm:$0x3] %v128
  %137 = vrot.lane.b32.xlu0 %v14, 112
  %v138 = vpop.permute.xlu0 %137
  %139 = vrot.lane.b32.xlu0 %v16, 112
  %v140 = vpop.permute.xlu0 %139
  %141 = vrot.lane.b32.xlu0 %v15, 112
  %v142 = vpop.permute.xlu0 %141
  %143 = vrot.lane.b32.xlu0 %v17, 112
  %v144 = vpop.permute.xlu0 %143
  %145 = vrot.lane.b32.xlu0 %v19, 112
  %v146 = vpop.permute.xlu0 %145
  %147 = vrot.lane.b32.xlu0 %v21, 112
  %v148 = vpop.permute.xlu0 %147
  %149 = vrot.lane.b32.xlu0 %v20, 112
  %v150 = vpop.permute.xlu0 %149
  %151 = vrot.lane.b32.xlu0 %v22, 112
  %v152 = vpop.permute.xlu0 %151
  %vm153 = vcmp.lt.s32.totalorder %v24, 112
  %v154 = vsel %vm153, %v146, %v150
  %v155 = vsel %vm153, %v148, %v152
  %v156 = vsel %vm153, %v142, %v146
  %v157 = vsel %vm153, %v144, %v148
  %v158 = vsel %vm153, %v138, %v142
  %v159 = vsel %vm153, %v140, %v144
  %v160 = vsel %vm153, %v150, %v138
  %v161 = vsel %vm153, %v152, %v140
  %v162 = vsel %vm101, 1, 0
  %v163 = vsel %vm102, 1, 0
  %v164 = vsel %vm103, 1, 0
  %v165 = vsel %vm104, 1, 0
  %v166 = vcvt.s32.f32 %v162
  %v167 = vcvt.s32.f32 %v163
  %v168 = vcvt.s32.f32 %v164
  %v169 = vcvt.s32.f32 %v165
  %v170 = vmul.f32 %v158, %v166
  %v171 = vmul.f32 %v156, %v167
  %v172 = vmul.f32 %v154, %v168
  %v173 = vmul.f32 %v160, %v169
  %v174 = vmul.f32 %v159, %v166
  %v175 = vmul.f32 %v157, %v167
  %v176 = vmul.f32 %v155, %v168
  %v177 = vmul.f32 %v161, %v169
  %178 = vst [vmem:[#allocation2 + $0x40] sm:$0xff] %v170
  %179 = vst [vmem:[#allocation2 + $0x48] sm:$0xff] %v171
  %180 = vst [vmem:[#allocation2 + $0x50] sm:$0xff] %v172
  %181 = vst [vmem:[#allocation2 + $0x58] sm:$0xff] %v173
  %182 = vst [vmem:[#allocation2 + $0x60] sm:$0x3] %v174
  %183 = vst [vmem:[#allocation2 + $0x68] sm:$0x3] %v175
  %184 = vst [vmem:[#allocation2 + $0x70] sm:$0x3] %v176
  %185 = vst [vmem:[#allocation2 + $0x78] sm:$0x3] %v177
  %186 = vrot.lane.b32.xlu0 %v14, 113
  %v187 = vpop.permute.xlu0 %186
  %188 = vrot.lane.b32.xlu0 %v16, 113
  %v189 = vpop.permute.xlu0 %188
  %190 = vrot.lane.b32.xlu0 %v15, 113
  %v191 = vpop.permute.xlu0 %190
  %192 = vrot.lane.b32.xlu0 %v17, 113
  %v193 = vpop.permute.xlu0 %192
  %194 = vrot.lane.b32.xlu0 %v19, 113
  %v195 = vpop.permute.xlu0 %194
  %196 = vrot.lane.b32.xlu0 %v21, 113
  %v197 = vpop.permute.xlu0 %196
  %198 = vrot.lane.b32.xlu0 %v20, 113
  %v199 = vpop.permute.xlu0 %198
  %200 = vrot.lane.b32.xlu0 %v22, 113
  %v201 = vpop.permute.xlu0 %200
  %vm202 = vcmp.lt.s32.totalorder %v24, 113
  %v203 = vsel %vm202, %v195, %v199
  %v204 = vsel %vm202, %v197, %v201
  %v205 = vsel %vm202, %v191, %v195
  %v206 = vsel %vm202, %v193, %v197
  %v207 = vsel %vm202, %v187, %v191
  %v208 = vsel %vm202, %v189, %v193
  %v209 = vsel %vm202, %v199, %v187
  %v210 = vsel %vm202, %v201, %v189
  %vm211 = vcmp.ge.s32.totalorder %v32, 1
  %vm212 = vcmp.ge.s32.totalorder %v33, 1
  %vm213 = vcmp.ge.s32.totalorder %v34, 1
  %vm214 = vcmp.ge.s32.totalorder %v35, 1
  %vm215 = vmand %vm101, %vm211
  %vm216 = vmand %vm102, %vm212
  %vm217 = vmand %vm103, %vm213
  %vm218 = vmand %vm104, %vm214
  %v219 = vsel %vm215, 1, 0
  %v220 = vsel %vm216, 1, 0
  %v221 = vsel %vm217, 1, 0
  %v222 = vsel %vm218, 1, 0
  %v223 = vcvt.s32.f32 %v219
  %v224 = vcvt.s32.f32 %v220
  %v225 = vcvt.s32.f32 %v221
  %v226 = vcvt.s32.f32 %v222
  %v227 = vmul.f32 %v207, %v223
  %v228 = vmul.f32 %v205, %v224
  %v229 = vmul.f32 %v203, %v225
  %v230 = vmul.f32 %v209, %v226
  %v231 = vmul.f32 %v208, %v223
  %v232 = vmul.f32 %v206, %v224
  %v233 = vmul.f32 %v204, %v225
  %v234 = vmul.f32 %v210, %v226
  %235 = vst [vmem:[#allocation2 + $0x80] sm:$0xff] %v227
  %236 = vst [vmem:[#allocation2 + $0x88] sm:$0xff] %v228
  %237 = vst [vmem:[#allocation2 + $0x90] sm:$0xff] %v229
  %238 = vst [vmem:[#allocation2 + $0x98] sm:$0xff] %v230
  %239 = vst [vmem:[#allocation2 + $0xa0] sm:$0x3] %v231
  %240 = vst [vmem:[#allocation2 + $0xa8] sm:$0x3] %v232
  %241 = vst [vmem:[#allocation2 + $0xb0] sm:$0x3] %v233
  %242 = vst [vmem:[#allocation2 + $0xb8] sm:$0x3] %v234
  %243 = vrot.lane.b32.xlu0 %v14, 127
  %v244 = vpop.permute.xlu0 %243
  %245 = vrot.lane.b32.xlu0 %v16, 127
  %v246 = vpop.permute.xlu0 %245
  %247 = vrot.lane.b32.xlu0 %v15, 127
  %v248 = vpop.permute.xlu0 %247
  %249 = vrot.lane.b32.xlu0 %v17, 127
  %v250 = vpop.permute.xlu0 %249
  %251 = vrot.lane.b32.xlu0 %v19, 127
  %v252 = vpop.permute.xlu0 %251
  %253 = vrot.lane.b32.xlu0 %v21, 127
  %v254 = vpop.permute.xlu0 %253
  %255 = vrot.lane.b32.xlu0 %v20, 127
  %v256 = vpop.permute.xlu0 %255
  %257 = vrot.lane.b32.xlu0 %v22, 127
  %v258 = vpop.permute.xlu0 %257
  %vm259 = vcmp.lt.s32.totalorder %v24, 127
  %v260 = vsel %vm259, %v252, %v256
  %v261 = vsel %vm259, %v254, %v258
  %v262 = vsel %vm259, %v248, %v252
  %v263 = vsel %vm259, %v250, %v254
  %v264 = vsel %vm259, %v244, %v248
  %v265 = vsel %vm259, %v246, %v250
  %v266 = vsel %vm259, %v256, %v244
  %v267 = vsel %vm259, %v258, %v246
  %v268 = vsel %vm105, 1, 0
  %v269 = vsel %vm106, 1, 0
  %v270 = vsel %vm107, 1, 0
  %v271 = vsel %vm108, 1, 0
  %v272 = vcvt.s32.f32 %v268
  %v273 = vcvt.s32.f32 %v269
  %v274 = vcvt.s32.f32 %v270
  %v275 = vcvt.s32.f32 %v271
  %v276 = vmul.f32 %v264, %v272
  %v277 = vmul.f32 %v262, %v273
  %v278 = vmul.f32 %v260, %v274
  %v279 = vmul.f32 %v266, %v275
  %v280 = vmul.f32 %v265, %v272
  %v281 = vmul.f32 %v263, %v273
  %v282 = vmul.f32 %v261, %v274
  %v283 = vmul.f32 %v267, %v275
  %284 = vst [vmem:[#allocation2 + $0xc0] sm:$0xff] %v276
  %285 = vst [vmem:[#allocation2 + $0xc8] sm:$0xff] %v277
  %286 = vst [vmem:[#allocation2 + $0xd0] sm:$0xff] %v278
  %287 = vst [vmem:[#allocation2 + $0xd8] sm:$0xff] %v279
  %288 = vst [vmem:[#allocation2 + $0xe0] sm:$0x3] %v280
  %289 = vst [vmem:[#allocation2 + $0xe8] sm:$0x3] %v281
  %290 = vst [vmem:[#allocation2 + $0xf0] sm:$0x3] %v282
  %291 = vst [vmem:[#allocation2 + $0xf8] sm:$0x3] %v283
  %292 = vst [vmem:[#allocation2 + $0x100] sm:$0xff] %v14
  %293 = vst [vmem:[#allocation2 + $0x108] sm:$0xff] %v15
  %294 = vst [vmem:[#allocation2 + $0x110] sm:$0xff] %v19
  %295 = vst [vmem:[#allocation2 + $0x118] sm:$0xff] %v20
  %296 = vst [vmem:[#allocation2 + $0x120] sm:$0x3] %v16
  %297 = vst [vmem:[#allocation2 + $0x128] sm:$0x3] %v17
  %298 = vst [vmem:[#allocation2 + $0x130] sm:$0x3] %v21
  %299 = vst [vmem:[#allocation2 + $0x138] sm:$0x3] %v22
  %300 = vrot.lane.b32.xlu0 %v14, 1
  %v301 = vpop.permute.xlu0 %300
  %302 = vrot.lane.b32.xlu0 %v16, 1
  %v303 = vpop.permute.xlu0 %302
  %304 = vrot.lane.b32.xlu0 %v15, 1
  %v305 = vpop.permute.xlu0 %304
  %306 = vrot.lane.b32.xlu0 %v17, 1
  %v307 = vpop.permute.xlu0 %306
  %308 = vrot.lane.b32.xlu0 %v19, 1
  %v309 = vpop.permute.xlu0 %308
  %310 = vrot.lane.b32.xlu0 %v21, 1
  %v311 = vpop.permute.xlu0 %310
  %312 = vrot.lane.b32.xlu0 %v20, 1
  %v313 = vpop.permute.xlu0 %312
  %314 = vrot.lane.b32.xlu0 %v22, 1
  %v315 = vpop.permute.xlu0 %314
  %vm316 = vcmp.lt.s32.totalorder %v24, 1
  %v317 = vsel %vm316, %v309, %v313
  %v318 = vsel %vm316, %v311, %v315
  %v319 = vsel %vm316, %v305, %v309
  %v320 = vsel %vm316, %v307, %v311
  %v321 = vsel %vm316, %v301, %v305
  %v322 = vsel %vm316, %v303, %v307
  %v323 = vsel %vm316, %v313, %v301
  %v324 = vsel %vm316, %v315, %v303
  %v325 = vsel %vm211, 1, 0
  %v326 = vsel %vm212, 1, 0
  %v327 = vsel %vm213, 1, 0
  %v328 = vsel %vm214, 1, 0
  %v329 = vcvt.s32.f32 %v325
  %v330 = vcvt.s32.f32 %v326
  %v331 = vcvt.s32.f32 %v327
  %v332 = vcvt.s32.f32 %v328
  %v333 = vmul.f32 %v323, %v329
  %v334 = vmul.f32 %v321, %v330
  %v335 = vmul.f32 %v319, %v331
  %v336 = vmul.f32 %v317, %v332
  %v337 = vmul.f32 %v324, %v329
  %v338 = vmul.f32 %v322, %v330
  %v339 = vmul.f32 %v320, %v331
  %v340 = vmul.f32 %v318, %v332
  %341 = vst [vmem:[#allocation2 + $0x140] sm:$0xff] %v333
  %342 = vst [vmem:[#allocation2 + $0x148] sm:$0xff] %v334
  %343 = vst [vmem:[#allocation2 + $0x150] sm:$0xff] %v335
  %344 = vst [vmem:[#allocation2 + $0x158] sm:$0xff] %v336
  %345 = vst [vmem:[#allocation2 + $0x160] sm:$0x3] %v337
  %346 = vst [vmem:[#allocation2 + $0x168] sm:$0x3] %v338
  %347 = vst [vmem:[#allocation2 + $0x170] sm:$0x3] %v339
  %348 = vst [vmem:[#allocation2 + $0x178] sm:$0x3] %v340
  %349 = vrot.lane.b32.xlu0 %v14, 15
  %v350 = vpop.permute.xlu0 %349
  %351 = vrot.lane.b32.xlu0 %v16, 15
  %v352 = vpop.permute.xlu0 %351
  %353 = vrot.lane.b32.xlu0 %v15, 15
  %v354 = vpop.permute.xlu0 %353
  %355 = vrot.lane.b32.xlu0 %v17, 15
  %v356 = vpop.permute.xlu0 %355
  %357 = vrot.lane.b32.xlu0 %v19, 15
  %v358 = vpop.permute.xlu0 %357
  %359 = vrot.lane.b32.xlu0 %v21, 15
  %v360 = vpop.permute.xlu0 %359
  %361 = vrot.lane.b32.xlu0 %v20, 15
  %v362 = vpop.permute.xlu0 %361
  %363 = vrot.lane.b32.xlu0 %v22, 15
  %v364 = vpop.permute.xlu0 %363
  %vm365 = vcmp.lt.s32.totalorder %v24, 15
  %v366 = vsel %vm365, %v358, %v362
  %v367 = vsel %vm365, %v360, %v364
  %v368 = vsel %vm365, %v354, %v358
  %v369 = vsel %vm365, %v356, %v360
  %v370 = vsel %vm365, %v350, %v354
  %v371 = vsel %vm365, %v352, %v356
  %v372 = vsel %vm365, %v362, %v350
  %v373 = vsel %vm365, %v364, %v352
  %vm374 = vcmp.ge.s32.totalorder %v36, 1
  %vm375 = vcmp.ge.s32.totalorder %v37, 1
  %vm376 = vcmp.ge.s32.totalorder %v38, 1
  %vm377 = vcmp.ge.s32.totalorder %v39, 1
  %vm378 = vmand %vm374, %vm105
  %vm379 = vmand %vm375, %vm106
  %vm380 = vmand %vm376, %vm107
  %vm381 = vmand %vm377, %vm108
  %v382 = vsel %vm378, 1, 0
  %v383 = vsel %vm379, 1, 0
  %v384 = vsel %vm380, 1, 0
  %v385 = vsel %vm381, 1, 0
  %v386 = vcvt.s32.f32 %v382
  %v387 = vcvt.s32.f32 %v383
  %v388 = vcvt.s32.f32 %v384
  %v389 = vcvt.s32.f32 %v385
  %v390 = vmul.f32 %v372, %v386
  %v391 = vmul.f32 %v370, %v387
  %v392 = vmul.f32 %v368, %v388
  %v393 = vmul.f32 %v366, %v389
  %v394 = vmul.f32 %v373, %v386
  %v395 = vmul.f32 %v371, %v387
  %v396 = vmul.f32 %v369, %v388
  %v397 = vmul.f32 %v367, %v389
  %398 = vst [vmem:[#allocation2 + $0x180] sm:$0xff] %v390
  %399 = vst [vmem:[#allocation2 + $0x188] sm:$0xff] %v391
  %400 = vst [vmem:[#allocation2 + $0x190] sm:$0xff] %v392
  %401 = vst [vmem:[#allocation2 + $0x198] sm:$0xff] %v393
  %402 = vst [vmem:[#allocation2 + $0x1a0] sm:$0x3] %v394
  %403 = vst [vmem:[#allocation2 + $0x1a8] sm:$0x3] %v395
  %404 = vst [vmem:[#allocation2 + $0x1b0] sm:$0x3] %v396
  %405 = vst [vmem:[#allocation2 + $0x1b8] sm:$0x3] %v397
  %406 = vrot.lane.b32.xlu0 %v14, 16
  %v407 = vpop.permute.xlu0 %406
  %408 = vrot.lane.b32.xlu0 %v16, 16
  %v409 = vpop.permute.xlu0 %408
  %410 = vrot.lane.b32.xlu0 %v15, 16
  %v411 = vpop.permute.xlu0 %410
  %412 = vrot.lane.b32.xlu0 %v17, 16
  %v413 = vpop.permute.xlu0 %412
  %414 = vrot.lane.b32.xlu0 %v19, 16
  %v415 = vpop.permute.xlu0 %414
  %416 = vrot.lane.b32.xlu0 %v21, 16
  %v417 = vpop.permute.xlu0 %416
  %418 = vrot.lane.b32.xlu0 %v20, 16
  %v419 = vpop.permute.xlu0 %418
  %420 = vrot.lane.b32.xlu0 %v22, 16
  %v421 = vpop.permute.xlu0 %420
  %vm422 = vcmp.lt.s32.totalorder %v24, 16
  %v423 = vsel %vm422, %v415, %v419
  %v424 = vsel %vm422, %v417, %v421
  %v425 = vsel %vm422, %v411, %v415
  %v426 = vsel %vm422, %v413, %v417
  %v427 = vsel %vm422, %v407, %v411
  %v428 = vsel %vm422, %v409, %v413
  %v429 = vsel %vm422, %v419, %v407
  %v430 = vsel %vm422, %v421, %v409
  %v431 = vsel %vm374, 1, 0
  %v432 = vsel %vm375, 1, 0
  %v433 = vsel %vm376, 1, 0
  %v434 = vsel %vm377, 1, 0
  %v435 = vcvt.s32.f32 %v431
  %v436 = vcvt.s32.f32 %v432
  %v437 = vcvt.s32.f32 %v433
  %v438 = vcvt.s32.f32 %v434
  %v439 = vmul.f32 %v429, %v435
  %v440 = vmul.f32 %v427, %v436
  %v441 = vmul.f32 %v425, %v437
  %v442 = vmul.f32 %v423, %v438
  %v443 = vmul.f32 %v430, %v435
  %v444 = vmul.f32 %v428, %v436
  %v445 = vmul.f32 %v426, %v437
  %v446 = vmul.f32 %v424, %v438
  %447 = vst [vmem:[#allocation2 + $0x1c0] sm:$0xff] %v439
  %448 = vst [vmem:[#allocation2 + $0x1c8] sm:$0xff] %v440
  %449 = vst [vmem:[#allocation2 + $0x1d0] sm:$0xff] %v441
  %450 = vst [vmem:[#allocation2 + $0x1d8] sm:$0xff] %v442
  %451 = vst [vmem:[#allocation2 + $0x1e0] sm:$0x3] %v443
  %452 = vst [vmem:[#allocation2 + $0x1e8] sm:$0x3] %v444
  %453 = vst [vmem:[#allocation2 + $0x1f0] sm:$0x3] %v445
  %454 = vst [vmem:[#allocation2 + $0x1f8] sm:$0x3] %v446
  %455 = vrot.lane.b32.xlu0 %v14, 17
  %v456 = vpop.permute.xlu0 %455
  %457 = vrot.lane.b32.xlu0 %v16, 17
  %v458 = vpop.permute.xlu0 %457
  %459 = vrot.lane.b32.xlu0 %v15, 17
  %v460 = vpop.permute.xlu0 %459
  %461 = vrot.lane.b32.xlu0 %v17, 17
  %v462 = vpop.permute.xlu0 %461
  %463 = vrot.lane.b32.xlu0 %v19, 17
  %v464 = vpop.permute.xlu0 %463
  %465 = vrot.lane.b32.xlu0 %v21, 17
  %v466 = vpop.permute.xlu0 %465
  %467 = vrot.lane.b32.xlu0 %v20, 17
  %v468 = vpop.permute.xlu0 %467
  %469 = vrot.lane.b32.xlu0 %v22, 17
  %v470 = vpop.permute.xlu0 %469
  %vm471 = vcmp.lt.s32.totalorder %v24, 17
  %v472 = vsel %vm471, %v464, %v468
  %v473 = vsel %vm471, %v466, %v470
  %v474 = vsel %vm471, %v460, %v464
  %v475 = vsel %vm471, %v462, %v466
  %v476 = vsel %vm471, %v456, %v460
  %v477 = vsel %vm471, %v458, %v462
  %v478 = vsel %vm471, %v468, %v456
  %v479 = vsel %vm471, %v470, %v458
  %vm480 = vmand %vm374, %vm211
  %vm481 = vmand %vm375, %vm212
  %vm482 = vmand %vm376, %vm213
  %vm483 = vmand %vm377, %vm214
  %v484 = vsel %vm480, 1, 0
  %v485 = vsel %vm481, 1, 0
  %v486 = vsel %vm482, 1, 0
  %v487 = vsel %vm483, 1, 0
  %v488 = vcvt.s32.f32 %v484
  %v489 = vcvt.s32.f32 %v485
  %v490 = vcvt.s32.f32 %v486
  %v491 = vcvt.s32.f32 %v487
  %v492 = vmul.f32 %v478, %v488
  %v493 = vmul.f32 %v476, %v489
  %v494 = vmul.f32 %v474, %v490
  %v495 = vmul.f32 %v472, %v491
  %v496 = vmul.f32 %v479, %v488
  %v497 = vmul.f32 %v477, %v489
  %v498 = vmul.f32 %v475, %v490
  %v499 = vmul.f32 %v473, %v491
  %500 = vst [vmem:[#allocation2 + $0x200] sm:$0xff] %v492
  %501 = vst [vmem:[#allocation2 + $0x208] sm:$0xff] %v493
  %502 = vst [vmem:[#allocation2 + $0x210] sm:$0xff] %v494
  %503 = vst [vmem:[#allocation2 + $0x218] sm:$0xff] %v495
  %504 = vst [vmem:[#allocation2 + $0x220] sm:$0x3] %v496
  %505 = vst [vmem:[#allocation2 + $0x228] sm:$0x3] %v497
  %506 = vst [vmem:[#allocation2 + $0x230] sm:$0x3] %v498
  %507 = vst [vmem:[#allocation2 + $0x238] sm:$0x3] %v499
  %v508 = vld [vmem:[%s1] sm:$0xff]
  %v509 = vld [vmem:[%s1 + $0x8] sm:$0xff]
  %v510 = vld [vmem:[%s1 + $0x10] sm:$0x3]
  %v511 = vld [vmem:[%s1 + $0x18] sm:$0x3]
  %v512 = vld [vmem:[#allocation2] sm:$0xff]
  %v513 = vld [vmem:[#allocation2 + $0x8] sm:$0xff]
  %v514 = vld [vmem:[#allocation2 + $0x10] sm:$0xff]
  %v515 = vld [vmem:[#allocation2 + $0x18] sm:$0xff]
  %v516 = vld [vmem:[#allocation2 + $0x20] sm:$0xff]
  %v517 = vld [vmem:[#allocation2 + $0x28] sm:$0xff]
  %v518 = vld [vmem:[#allocation2 + $0x30] sm:$0xff]
  %v519 = vld [vmem:[#allocation2 + $0x38] sm:$0xff]
  %v520 = vld [vmem:[#allocation2 + $0x40] sm:$0xff]
  %v521 = vld [vmem:[#allocation2 + $0x48] sm:$0xff]
  %v522 = vld [vmem:[#allocation2 + $0x50] sm:$0xff]
  %v523 = vld [vmem:[#allocation2 + $0x58] sm:$0xff]
  %v524 = vld [vmem:[#allocation2 + $0x60] sm:$0xff]
  %v525 = vld [vmem:[#allocation2 + $0x68] sm:$0xff]
  %v526 = vld [vmem:[#allocation2 + $0x70] sm:$0xff]
  %v527 = vld [vmem:[#allocation2 + $0x78] sm:$0xff]
  %v528 = vld [vmem:[#allocation2 + $0x80] sm:$0xff]
  %v529 = vld [vmem:[#allocation2 + $0x88] sm:$0xff]
  %v530 = vld [vmem:[#allocation2 + $0x90] sm:$0xff]
  %v531 = vld [vmem:[#allocation2 + $0x98] sm:$0xff]
  %v532 = vld [vmem:[#allocation2 + $0xa0] sm:$0xff]
  %v533 = vld [vmem:[#allocation2 + $0xa8] sm:$0xff]
  %v534 = vld [vmem:[#allocation2 + $0xb0] sm:$0xff]
  %v535 = vld [vmem:[#allocation2 + $0xb8] sm:$0xff]
  %v536 = vld [vmem:[#allocation2 + $0xc0] sm:$0xff]
  %v537 = vld [vmem:[#allocation2 + $0xc8] sm:$0xff]
  %v538 = vld [vmem:[#allocation2 + $0xd0] sm:$0xff]
  %v539 = vld [vmem:[#allocation2 + $0xd8] sm:$0xff]
  %v540 = vld [vmem:[#allocation2 + $0xe0] sm:$0xff]
  %v541 = vld [vmem:[#allocation2 + $0xe8] sm:$0xff]
  %v542 = vld [vmem:[#allocation2 + $0xf0] sm:$0xff]
  %v543 = vld [vmem:[#allocation2 + $0xf8] sm:$0xff]
  %v544 = vld [vmem:[#allocation2 + $0x100] sm:$0xff]
  %v545 = vld [vmem:[#allocation2 + $0x108] sm:$0xff]
  %v546 = vld [vmem:[#allocation2 + $0x110] sm:$0xff]
  %v547 = vld [vmem:[#allocation2 + $0x118] sm:$0xff]
  %v548 = vld [vmem:[#allocation2 + $0x120] sm:$0xff]
  %v549 = vld [vmem:[#allocation2 + $0x128] sm:$0xff]
  %v550 = vld [vmem:[#allocation2 + $0x130] sm:$0xff]
  %v551 = vld [vmem:[#allocation2 + $0x138] sm:$0xff]
  %v552 = vld [vmem:[#allocation2 + $0x140] sm:$0xff]
  %v553 = vld [vmem:[#allocation2 + $0x148] sm:$0xff]
  %v554 = vld [vmem:[#allocation2 + $0x150] sm:$0xff]
  %v555 = vld [vmem:[#allocation2 + $0x158] sm:$0xff]
  %v556 = vld [vmem:[#allocation2 + $0x160] sm:$0xff]
  %v557 = vld [vmem:[#allocation2 + $0x168] sm:$0xff]
  %v558 = vld [vmem:[#allocation2 + $0x170] sm:$0xff]
  %v559 = vld [vmem:[#allocation2 + $0x178] sm:$0xff]
  %v560 = vld [vmem:[#allocation2 + $0x180] sm:$0xff]
  %v561 = vld [vmem:[#allocation2 + $0x188] sm:$0xff]
  %v562 = vld [vmem:[#allocation2 + $0x190] sm:$0xff]
  %v563 = vld [vmem:[#allocation2 + $0x198] sm:$0xff]
  %v564 = vld [vmem:[#allocation2 + $0x1a0] sm:$0xff]
  %v565 = vld [vmem:[#allocation2 + $0x1a8] sm:$0xff]
  %v566 = vld [vmem:[#allocation2 + $0x1b0] sm:$0xff]
  %v567 = vld [vmem:[#allocation2 + $0x1b8] sm:$0xff]
  %v568 = vld [vmem:[#allocation2 + $0x1c0] sm:$0xff]
  %v569 = vld [vmem:[#allocation2 + $0x1c8] sm:$0xff]
  %v570 = vld [vmem:[#allocation2 + $0x1d0] sm:$0xff]
  %v571 = vld [vmem:[#allocation2 + $0x1d8] sm:$0xff]
  %v572 = vld [vmem:[#allocation2 + $0x1e0] sm:$0xff]
  %v573 = vld [vmem:[#allocation2 + $0x1e8] sm:$0xff]
  %v574 = vld [vmem:[#allocation2 + $0x1f0] sm:$0xff]
  %v575 = vld [vmem:[#allocation2 + $0x1f8] sm:$0xff]
  %v576 = vld [vmem:[#allocation2 + $0x200] sm:$0xff]
  %v577 = vld [vmem:[#allocation2 + $0x208] sm:$0xff]
  %v578 = vld [vmem:[#allocation2 + $0x210] sm:$0xff]
  %v579 = vld [vmem:[#allocation2 + $0x218] sm:$0xff]
  %v580 = vld [vmem:[#allocation2 + $0x220] sm:$0xff]
  %v581 = vld [vmem:[#allocation2 + $0x228] sm:$0xff]
  %v582 = vld [vmem:[#allocation2 + $0x230] sm:$0xff]
  %v583 = vld [vmem:[#allocation2 + $0x238] sm:$0xff]
  %v584 = vld [vmem:[%s2] sm:$0xff]
  %v585 = vld [vmem:[%s2 + $0x8] sm:$0x3]
  %587 = vset.pattern.permute.xlu0 0
  %588 = vperm.xlu0 %587, %v584
  %v589 = vpop.permute.xlu0 %588
  %592 = vset.pattern.permute.xlu0 0
  %593 = vperm.xlu0 %592, %v585
  %v594 = vpop.permute.xlu0 %593
  %vm596 = vcmask 130048
  %v598 = vsel %vm596, %v509, 0
  %v601 = vsel %vm596, %v511, 0
  %603 = vmatprep.subr.mxu0 %v573
  %604 = vmatpush1.msra.mxu0 %v572
  %605 = vmatprep.subr.mxu0 %v569
  %606 = vmatpush1.msra.mxu0 %v568
  %607 = vmatprep.subr.mxu0 %v565
  %608 = vmatpush1.msra.mxu0 %v564
  %609 = vmatprep.subr.mxu0 %v561
  %610 = vmatpush1.msra.mxu0 %v560
  %611 = vmatprep.subr.mxu0 %v557
  %612 = vmatpush1.msra.mxu0 %v556
  %613 = vmatprep.subr.mxu0 %v553
  %614 = vmatpush1.msra.mxu0 %v552
  %615 = vmatprep.subr.mxu0 %v549
  %616 = vmatpush1.msra.mxu0 %v548
  %617 = vmatprep.subr.mxu0 %v545
  %618 = vmatpush1.msra.mxu0 %v544
  %619 = vmatprep.subr.mxu0 %v541
  %620 = vmatpush1.msra.mxu0 %v540
  %621 = vmatprep.subr.mxu0 %v537
  %622 = vmatpush1.msra.mxu0 %v536
  %623 = vmatprep.subr.mxu0 %v533
  %624 = vmatpush1.msra.mxu0 %v532
  %625 = vmatprep.subr.mxu0 %v529
  %626 = vmatpush1.msra.mxu0 %v528
  %627 = vmatprep.subr.mxu0 %v525
  %628 = vmatpush1.msra.mxu0 %v524
  %629 = vmatprep.subr.mxu0 %v521
  %630 = vmatpush1.msra.mxu0 %v520
  %631 = vmatprep.subr.mxu0 %v517
  %632 = vmatpush1.msra.mxu0 %v516
  %633 = vmatprep.subr.mxu0 %v513
  %634 = vmatpush1.msra.mxu0 %v512
  %635 = vmatprep.subr.mxu0 0.0
  %636 = vmatpush2.msra.mxu0 0.0
  %637 = vmatprep.subr.mxu0 0.0
  %638 = vmatpush2.msra.mxu0 0.0
  %639 = vmatprep.subr.mxu0 0.0
  %640 = vmatpush2.msra.mxu0 0.0
  %641 = vmatprep.subr.mxu0 0.0
  %642 = vmatpush2.msra.mxu0 0.0
  %643 = vmatprep.subr.mxu0 0.0
  %644 = vmatpush2.msra.mxu0 0.0
  %645 = vmatprep.subr.mxu0 0.0
  %646 = vmatpush2.msra.mxu0 0.0
  %647 = vmatprep.subr.mxu0 0.0
  %648 = vmatpush2.msra.mxu0 0.0
  %649 = vmatprep.subr.mxu0 0.0
  %650 = vmatpush2.msra.mxu0 0.0
  %651 = vmatprep.subr.mxu0 0.0
  %652 = vmatpush2.msra.mxu0 0.0
  %653 = vmatprep.subr.mxu0 0.0
  %654 = vmatpush2.msra.mxu0 0.0
  %655 = vmatprep.subr.mxu0 0.0
  %656 = vmatpush2.msra.mxu0 0.0
  %657 = vmatprep.subr.mxu0 0.0
  %658 = vmatpush2.msra.mxu0 0.0
  %659 = vmatprep.subr.mxu0 0.0
  %660 = vmatpush2.msra.mxu0 0.0
  %661 = vmatprep.subr.mxu0 0.0
  %662 = vmatpush2.msra.mxu0 0.0
  %663 = vmatprep.subr.mxu0 %v581
  %664 = vmatpush2.msra.mxu0 %v580
  %665 = vmatprep.subr.mxu0 %v577
  %666 = vmatpush2.msra.mxu0 %v576
  %667 = vmatprep.mubr.f32.mxu0 %v598
  %668 = vmatmul.mubr.f32.gmra.mxu0 %v508
  %v669 = vpop.f32.mrf.mxu0
  %v670 = vadd.f32 %v589, %v669
  %v671 = vpop.f32.mrf.mxu0
  %v672 = vadd.f32 %v589, %v671
  %673 = vmatprep.mubr.f32.mxu0 %v601
  %674 = vmatmul.mubr.f32.gmra.mxu0 %v510
  %v675 = vpop.f32.mrf.mxu0
  %v676 = vadd.f32 %v594, %v675
  %v677 = vpop.f32.mrf.mxu0
  %v678 = vadd.f32 %v594, %v677
  %679 = vdwg.mxu0
  %680 = vmatprep.subr.mxu0 %v575
  %681 = vmatpush1.msra.mxu0 %v574
  %682 = vmatprep.subr.mxu0 %v571
  %683 = vmatpush1.msra.mxu0 %v570
  %684 = vmatprep.subr.mxu0 %v567
  %685 = vmatpush1.msra.mxu0 %v566
  %686 = vmatprep.subr.mxu0 %v563
  %687 = vmatpush1.msra.mxu0 %v562
  %688 = vmatprep.subr.mxu0 %v559
  %689 = vmatpush1.msra.mxu0 %v558
  %690 = vmatprep.subr.mxu0 %v555
  %691 = vmatpush1.msra.mxu0 %v554
  %692 = vmatprep.subr.mxu0 %v551
  %693 = vmatpush1.msra.mxu0 %v550
  %694 = vmatprep.subr.mxu0 %v547
  %695 = vmatpush1.msra.mxu0 %v546
  %696 = vmatprep.subr.mxu0 %v543
  %697 = vmatpush1.msra.mxu0 %v542
  %698 = vmatprep.subr.mxu0 %v539
  %699 = vmatpush1.msra.mxu0 %v538
  %700 = vmatprep.subr.mxu0 %v535
  %701 = vmatpush1.msra.mxu0 %v534
  %702 = vmatprep.subr.mxu0 %v531
  %703 = vmatpush1.msra.mxu0 %v530
  %704 = vmatprep.subr.mxu0 %v527
  %705 = vmatpush1.msra.mxu0 %v526
  %706 = vmatprep.subr.mxu0 %v523
  %707 = vmatpush1.msra.mxu0 %v522
  %708 = vmatprep.subr.mxu0 %v519
  %709 = vmatpush1.msra.mxu0 %v518
  %710 = vmatprep.subr.mxu0 %v515
  %711 = vmatpush1.msra.mxu0 %v514
  %712 = vmatprep.subr.mxu0 0.0
  %713 = vmatpush2.msra.mxu0 0.0
  %714 = vmatprep.subr.mxu0 0.0
  %715 = vmatpush2.msra.mxu0 0.0
  %716 = vmatprep.subr.mxu0 0.0
  %717 = vmatpush2.msra.mxu0 0.0
  %718 = vmatprep.subr.mxu0 0.0
  %719 = vmatpush2.msra.mxu0 0.0
  %720 = vmatprep.subr.mxu0 0.0
  %721 = vmatpush2.msra.mxu0 0.0
  %722 = vmatprep.subr.mxu0 0.0
  %723 = vmatpush2.msra.mxu0 0.0
  %724 = vmatprep.subr.mxu0 0.0
  %725 = vmatpush2.msra.mxu0 0.0
  %726 = vmatprep.subr.mxu0 0.0
  %727 = vmatpush2.msra.mxu0 0.0
  %728 = vmatprep.subr.mxu0 0.0
  %729 = vmatpush2.msra.mxu0 0.0
  %730 = vmatprep.subr.mxu0 0.0
  %731 = vmatpush2.msra.mxu0 0.0
  %732 = vmatprep.subr.mxu0 0.0
  %733 = vmatpush2.msra.mxu0 0.0
  %734 = vmatprep.subr.mxu0 0.0
  %735 = vmatpush2.msra.mxu0 0.0
  %736 = vmatprep.subr.mxu0 0.0
  %737 = vmatpush2.msra.mxu0 0.0
  %738 = vmatprep.subr.mxu0 0.0
  %739 = vmatpush2.msra.mxu0 0.0
  %740 = vmatprep.subr.mxu0 %v583
  %741 = vmatpush2.msra.mxu0 %v582
  %742 = vmatprep.subr.mxu0 %v579
  %743 = vmatpush2.msra.mxu0 %v578
  %744 = vmatprep.mubr.f32.mxu0 %v598
  %745 = vmatmul.mubr.f32.gmra.mxu0 %v508
  %v746 = vpop.f32.mrf.mxu0
  %v747 = vadd.f32 %v589, %v746
  %v748 = vpop.f32.mrf.mxu0
  %v749 = vadd.f32 %v589, %v748
  %750 = vmatprep.mubr.f32.mxu0 %v601
  %751 = vmatmul.mubr.f32.gmra.mxu0 %v510
  %v752 = vpop.f32.mrf.mxu0
  %v753 = vadd.f32 %v594, %v752
  %v754 = vpop.f32.mrf.mxu0
  %v755 = vadd.f32 %v594, %v754
  %756 = vdwg.mxu0
  %v757 = vmul.f32 %v670, 0.5
  %v758 = vmul.f32 %v672, 0.5
  %v759 = vmul.f32 %v747, 0.5
  %v760 = vmul.f32 %v749, 0.5
  %v761 = vmul.f32 %v676, 0.5
  %v762 = vmul.f32 %v678, 0.5
  %v763 = vmul.f32 %v753, 0.5
  %v764 = vmul.f32 %v755, 0.5
  %v765 = vtanh.pop %v757
  %v766 = vtanh.pop %v758
  %v767 = vtanh.pop %v759
  %v768 = vtanh.pop %v760
  %v769 = vtanh.pop %v761
  %v770 = vtanh.pop %v762
  %v771 = vtanh.pop %v763
  %v772 = vtanh.pop %v764
  %v773 = vadd.f32 %v765, 1.0
  %v774 = vadd.f32 %v766, 1.0
  %v775 = vadd.f32 %v767, 1.0
  %v776 = vadd.f32 %v768, 1.0
  %v777 = vadd.f32 %v769, 1.0
  %v778 = vadd.f32 %v770, 1.0
  %v779 = vadd.f32 %v771, 1.0
  %v780 = vadd.f32 %v772, 1.0
  %v781 = vmul.f32 %v773, 0.5
  %v782 = vmul.f32 %v774, 0.5
  %v783 = vmul.f32 %v775, 0.5
  %v784 = vmul.f32 %v776, 0.5
  %v785 = vmul.f32 %v777, 0.5
  %v786 = vmul.f32 %v778, 0.5
  %v787 = vmul.f32 %v779, 0.5
  %v788 = vmul.f32 %v780, 0.5
  %789 = vst [vmem:[%s3] sm:$0xff] %v781
  %790 = vst [vmem:[%s3 + $0x8] sm:$0xff] %v782
  %791 = vst [vmem:[%s3 + $0x10] sm:$0x3] %v785
  %792 = vst [vmem:[%s3 + $0x18] sm:$0x3] %v786
  %s793 = scalar_lea.vmem %s3, 32
  %794 = vst [vmem:[%s793] sm:$0xff] %v783
  %795 = vst [vmem:[%s793 + $0x8] sm:$0xff] %v784
  %796 = vst [vmem:[%s793 + $0x10] sm:$0x3] %v787
  %797 = vst [vmem:[%s793 + $0x18] sm:$0x3] %v788
  // Predicated region
  $region14: #{_run.1} parent=0 // pred_check
    _
  $region15: #{_run.1} parent=0 // pred_check_branch
    %799 = sbr.rel (0) target = $region17
  $region16: #{_run.1} parent=0 // pred_region
    _
  $region17: #{_run.1} parent=0 // pred_fallthru
    _
  // Predicated region
  $region18: #{_run.1} parent=0 // pred_check
    _
  $region19: #{_run.1} parent=0 // pred_check_branch
    %801 = sbr.rel (0) target = $region21
  $region20: #{_run.1} parent=0 // pred_region
    _
  $region21: #{_run.1} parent=0 // pred_fallthru
    _

</llo_original>
